<compile_context>
chip_gen: v5e
topology: v5e:2x2
jax: 0.10.0
libtpu: 0.0.40
codegen_flags: <defaults>
</compile_context>

<pallas_src>
import functools
import math

import jax
import jax.numpy as jnp
from jax.experimental import pallas as pl
from jax.experimental.pallas import tpu as pltpu

LN_EPS = 1e-5                      # nn.LayerNorm default
_INV_SQRT2 = 1.0 / math.sqrt(2.0)


def _round_up(x, m):
    return (x + m - 1) // m * m


def _mmp_kernel(x_ref, w_ref, p_ref, o_ref, acc_ref, *, d_valid, pad_cols, approx_gelu):
    """One (row-tile, K-tile) grid step: accumulate matmul; LN + GELU epilogue on last K step."""
    k = pl.program_id(1)

    @pl.when(k == 0)
    def _():
        acc_ref[...] = jnp.zeros_like(acc_ref)

    # MXU matmul with f32 accumulation (inputs may be bf16).
    acc_ref[...] += jnp.dot(x_ref[...], w_ref[...], preferred_element_type=jnp.float32)

    @pl.when(k == pl.num_programs(1) - 1)
    def _():
        bias = p_ref[0:1, :]
        gamma = p_ref[1:2, :]
        beta = p_ref[2:3, :]
        y = acc_ref[...] + bias

        # Two-pass LayerNorm statistics over the *valid* feature width.
        # Padded W/bias columns are exact zeros, so there y == 0 and (y - mean)^2 == mean^2:
        # subtract that known contribution analytically instead of masking.
        inv_d = 1.0 / d_valid
        mean = jnp.sum(y, axis=-1, keepdims=True) * inv_d
        yc = y - mean
        var = (jnp.sum(yc * yc, axis=-1, keepdims=True) - pad_cols * (mean * mean)) * inv_d
        var = jnp.maximum(var, 0.0)
        yn = yc * jax.lax.rsqrt(var + LN_EPS)
        yn = yn * gamma + beta

        if approx_gelu:
            # tanh-form GELU: transcendental lands on the EUP slot (frees VALU bundles).
            out = jax.nn.gelu(yn, approximate=True)
        else:
            # Exact erf form — PyTorch nn.GELU default.
            out = 0.5 * yn * (1.0 + jax.lax.erf(yn * _INV_SQRT2))

        # gamma/beta padding is 0 -> padded output columns are exactly 0 (sliced off outside).
        o_ref[...] = out.astype(o_ref.dtype)


def _choose_tiling(n, in_dim, out_dim_p, x_item, w_item, out_item, *,
                   tm_max, vmem_budget, row_gran, force_tk=None):
    """Pick (row tile, K tile, k_tiled flag, VMEM estimate) under a VMEM budget."""
    params_bytes = 3 * out_dim_p * 4                     # resident (3, out_p) f32 block

    def per_row(tk):
        return (2 * tk * x_item                          # double-buffered x tile
                + 2 * out_dim_p * out_item               # double-buffered out tile
                + out_dim_p * 4                          # f32 accumulator scratch
                + 4 * out_dim_p * 4)                     # live f32 intermediates (y/yc/yn/out)

    full_w = in_dim * out_dim_p * w_item                 # resident weight, single-buffered
    n_rows = _round_up(max(n, 1), row_gran)

    if force_tk is not None:
        tk = min(int(force_tk), in_dim)
        k_tiled = tk < in_dim
        w_bytes = (2 if k_tiled else 1) * tk * out_dim_p * w_item
    elif full_w + params_bytes + per_row(in_dim) * min(128, n_rows) <= vmem_budget:
        # Full-K resident weight still leaves room for a healthy row tile.
        tk, w_bytes, k_tiled = in_dim, full_w, False
    else:
        # Weight alone would blow VMEM (e.g. big W on v7x's 64 MiB): K-tile it.
        k_tiled = True
        tk = 128
        for cand in (2048, 1024, 512, 256, 128):
            if cand <= in_dim and (2 * cand * out_dim_p * w_item
                                   + params_bytes + per_row(cand) * 128) <= vmem_budget:
                tk = cand
                break
        w_bytes = 2 * tk * out_dim_p * w_item

    avail = max(vmem_budget - w_bytes - params_bytes, 1 << 20)
    tm = min(tm_max, max(row_gran, avail // per_row(tk)))
    tm = max(row_gran, (tm // row_gran) * row_gran)
    tm = min(tm, n_rows)
    # Force >= 2 row-grid steps (>= 4 when that keeps tiles >= 128 rows) so the pipeline
    # runs and, on v7x, both TensorCores get work under dimension_semantics=("parallel",...).
    if n_rows >= 2 * row_gran:
        cap2 = _round_up(-(-n_rows // 2), row_gran)
        cap4 = _round_up(-(-n_rows // 4), row_gran)
        cap = cap4 if cap4 >= 128 else cap2
        tm = min(tm, max(row_gran, cap))
    est = w_bytes + params_bytes + per_row(tk) * tm
    return int(tm), int(tk), bool(k_tiled), int(est)


def prepare_params(w, b, gamma, beta, *, matmul_dtype=jnp.bfloat16):
    """Pad / cast the per-layer constants once (hoist out of the per-call hot path).

    Returns (w_padded, params, out_dim): W padded lane-dense to out_dim_p = round_up(out, 128)
    and cast to matmul_dtype; params is a (3, out_dim_p) f32 block = [bias; gamma; beta].
    """
    out_dim = int(w.shape[1])
    out_dim_p = _round_up(out_dim, 128)
    pad_f = out_dim_p - out_dim

    w_p = jnp.pad(w, ((0, 0), (0, pad_f))) if pad_f else w
    if matmul_dtype is not None:
        w_p = w_p.astype(matmul_dtype)

    def pad1(v):
        v = v.reshape(-1).astype(jnp.float32)
        return jnp.pad(v, (0, pad_f)) if pad_f else v

    params = jnp.stack([pad1(b), pad1(gamma), pad1(beta)], axis=0)
    return w_p, params, out_dim


def multimodal_projection(x, w=None, b=None, gamma=None, beta=None, *,
                          prepared=None, matmul_dtype=jnp.bfloat16, tm=512,
                          vmem_budget_bytes=None, approx_gelu=False, _force_tk=None):
    """x: (..., input_dim) -> GELU(LayerNorm(x @ w + b)) with shape (..., output_dim).

    `prepared` (from prepare_params) lets callers cache padded/cast parameters across calls.
    matmul_dtype=jnp.bfloat16 (default) feeds the MXU at full rate with f32 accumulation;
    pass jnp.float32 to opt out for tight numerical matching.
    """
    if prepared is None:
        prepared = prepare_params(w, b, gamma, beta, matmul_dtype=matmul_dtype)
    w_p, params, out_dim = prepared
    out_dim_p = int(w_p.shape[1])

    orig_shape = x.shape
    in_dim = int(orig_shape[-1])
    out_dtype = x.dtype

    x2d = x.reshape(-1, in_dim)
    if matmul_dtype is not None and x2d.dtype != matmul_dtype:
        x2d = x2d.astype(matmul_dtype)
    n = int(x2d.shape[0])

    x_item = x2d.dtype.itemsize
    w_item = w_p.dtype.itemsize
    out_item = jnp.dtype(out_dtype).itemsize
    row_gran = max(8, 32 // x_item)          # 8 rows for f32 tiles, 16 for bf16, 32 for int8

    # Generation-aware VMEM budget (v5e/v6e: 128 MiB; v7x: 64 MiB per TensorCore).
    try:
        vmem_cap = int(pltpu.get_tpu_info().vmem_capacity_bytes)
    except Exception:
        vmem_cap = 64 << 20                  # conservative fallback
    if vmem_budget_bytes is None:
        vmem_budget_bytes = (vmem_cap * 3) // 4      # ~96 MiB v5e/v6e, ~48 MiB v7x
    vmem_limit_cap = (vmem_cap * 17) // 20           # ~108 MiB v5e/v6e, ~54 MiB v7x

    tm_eff, tk, _k_tiled, est_bytes = _choose_tiling(
        n, in_dim, out_dim_p, x_item, w_item, out_item,
        tm_max=tm, vmem_budget=vmem_budget_bytes, row_gran=row_gran, force_tk=_force_tk)

    # K padding (only when the weight had to be K-tiled).
    in_dim_p = _round_up(in_dim, tk)
    if in_dim_p != in_dim:
        x2d = jnp.pad(x2d, ((0, 0), (0, in_dim_p - in_dim)))
        w_p = jnp.pad(w_p, ((0, in_dim_p - in_dim), (0, 0)))
    n_k = in_dim_p // tk

    # Row padding to a tile multiple (no divisibility assert).
    n_pad = _round_up(max(n, 1), tm_eff)
    if n_pad != n:
        x2d = jnp.pad(x2d, ((0, n_pad - n), (0, 0)))
    n_rows_grid = n_pad // tm_eff

    vmem_limit = int(max(32 << 20, min(est_bytes * 3 // 2 + (4 << 20), vmem_limit_cap)))

    kernel = functools.partial(
        _mmp_kernel, d_valid=float(out_dim),
        pad_cols=float(out_dim_p - out_dim), approx_gelu=approx_gelu)

    if n_k == 1:
        # Resident, single-buffered weight; optionally deepen the x pipeline when the
        # row grid is long (most useful on DMA-exposed v5e) and VMEM headroom allows.
        deep_x = (n_rows_grid >= 8
                  and est_bytes + tm_eff * tk * x_item <= vmem_budget_bytes)
        if deep_x:
            x_spec = pl.BlockSpec((tm_eff, tk), lambda i, kk: (i, 0),
                                  pipeline_mode=pl.Buffered(3))
        else:
            x_spec = pl.BlockSpec((tm_eff, tk), lambda i, kk: (i, 0))
        w_spec = pl.BlockSpec((tk, out_dim_p), lambda i, kk: (0, 0),
                              pipeline_mode=pl.Buffered(1))
    else:
        # K-tiled fallback: weight blocks stream along the reduction axis (double-buffered).
        x_spec = pl.BlockSpec((tm_eff, tk), lambda i, kk: (i, kk))
        w_spec = pl.BlockSpec((tk, out_dim_p), lambda i, kk: (kk, 0))
    p_spec = pl.BlockSpec((3, out_dim_p), lambda i, kk: (0, 0),
                          pipeline_mode=pl.Buffered(1))

    out = pl.pallas_call(
        kernel,
        out_shape=jax.ShapeDtypeStruct((n_pad, out_dim_p), out_dtype),
        grid_spec=pltpu.PrefetchScalarGridSpec(
            num_scalar_prefetch=0,
            grid=(n_rows_grid, n_k),
            in_specs=[x_spec, w_spec, p_spec],
            out_specs=pl.BlockSpec((tm_eff, out_dim_p), lambda i, kk: (i, 0)),
            scratch_shapes=[pltpu.VMEM((tm_eff, out_dim_p), jnp.float32)],
        ),
        compiler_params=pltpu.CompilerParams(
            dimension_semantics=("parallel", "arbitrary"),
            vmem_limit_bytes=vmem_limit,
        ),
    )(x2d, w_p, params)

    out = out[:n, :out_dim]
    return out.reshape(*orig_shape[:-1], out_dim)


def reference(x, w, b, gamma, beta):
    y = jnp.einsum("...i,io->...o", x, w, precision=jax.lax.Precision.HIGHEST) + b
    mean = jnp.mean(y, axis=-1, keepdims=True)
    var = jnp.mean((y - mean) ** 2, axis=-1, keepdims=True)
    yn = (y - mean) / jnp.sqrt(var + LN_EPS)
    yn = yn * gamma + beta
    return jax.nn.gelu(yn, approximate=False)


if __name__ == "__main__":
    key = jax.random.PRNGKey(0)
    k_x, k_w, k_b, k_g, k_be, k_x2, k_x3, k_w2 = jax.random.split(key, 8)

    batch, seq, input_dim, output_dim = 2, 8, 32, 64

    x = jax.random.normal(k_x, (batch, seq, input_dim), dtype=jnp.float32)
    # Deterministic synthetic parameters (shapes match nn.Linear / nn.LayerNorm).
    w = jax.random.normal(k_w, (input_dim, output_dim), dtype=jnp.float32) / jnp.sqrt(input_dim)
    b = 0.01 * jax.random.normal(k_b, (output_dim,), dtype=jnp.float32)
    gamma = 1.0 + 0.05 * jax.random.normal(k_g, (output_dim,), dtype=jnp.float32)
    beta = 0.05 * jax.random.normal(k_be, (output_dim,), dtype=jnp.float32)

    ref = reference(x, w, b, gamma, beta)

    # Default path: bf16 MXU inputs, f32 accumulation + f32 LN/GELU epilogue.
    prepared_bf16 = prepare_params(w, b, gamma, beta, matmul_dtype=jnp.bfloat16)
    out = jax.block_until_ready(multimodal_projection(x, prepared=prepared_bf16))
    assert out.shape == (batch, seq, output_dim)
    assert jnp.allclose(out, ref, atol=3e-2, rtol=3e-2), "mismatch vs reference (bf16 MXU path)"

    # f32 opt-out path: tight tolerance; also exercises the >=2-row-step grid (tm=8).
    prepared_f32 = prepare_params(w, b, gamma, beta, matmul_dtype=jnp.float32)
    out_f32 = jax.block_until_ready(
        multimodal_projection(x, prepared=prepared_f32, matmul_dtype=jnp.float32))
    assert jnp.allclose(out_f32, ref, atol=3e-5, rtol=3e-5), "mismatch vs reference (f32 path)"

    # Row count not divisible by the tile granularity -> exercises row padding.
    x_odd = jax.random.normal(k_x2, (3, 5, input_dim), dtype=jnp.float32)
    out_odd = jax.block_until_ready(
        multimodal_projection(x_odd, prepared=prepared_f32, matmul_dtype=jnp.float32))
    ref_odd = reference(x_odd, w, b, gamma, beta)
    assert out_odd.shape == (3, 5, output_dim)
    assert jnp.allclose(out_odd, ref_odd, atol=3e-5, rtol=3e-5), "mismatch (padded rows)"

    # K-tiled fallback (big-W / v7x path), forced small here for coverage: grid=(rows, 2).
    in_dim2 = 256
    x_kt = jax.random.normal(k_x3, (batch, seq, in_dim2), dtype=jnp.float32)
    w_kt = jax.random.normal(k_w2, (in_dim2, output_dim), dtype=jnp.float32) / jnp.sqrt(in_dim2)
    prepared_kt = prepare_params(w_kt, b, gamma, beta, matmul_dtype=jnp.float32)
    out_kt = jax.block_until_ready(
        multimodal_projection(x_kt, prepared=prepared_kt, matmul_dtype=jnp.float32,
                              _force_tk=128))
    ref_kt = reference(x_kt, w_kt, b, gamma, beta)
    assert jnp.allclose(out_kt, ref_kt, atol=2e-4, rtol=2e-4), "mismatch (K-tiled path)"

    print("KERNEL_OK")
</pallas_src>

<mosaic_0001>
module attributes {stable_mosaic.version = 11 : i64} {
  func.func @_mmp_kernel(%arg0: i32, %arg1: i32, %arg2: memref<16x32xbf16, #tpu.memory_space<vmem>>, %arg3: memref<32x128xbf16, #tpu.memory_space<vmem>>, %arg4: memref<3x128xf32, #tpu.memory_space<vmem>>, %arg5: memref<16x128xf32, #tpu.memory_space<vmem>>, %arg6: memref<16x128xf32, #tpu.memory_space<vmem>>) attributes {dimension_semantics = [#tpu.dimension_semantics<parallel>, #tpu.dimension_semantics<arbitrary>], iteration_bounds = array<i64: 1, 1>, scalar_prefetch = 0 : i64, scratch_operands = 1 : i64, tpu.core_type = #tpu.core_type<tc>, window_params = [{transform_indices = @transform_0, window_bounds = array<i64: 16, 32>}, {pipeline_mode = #tpu.pipeline_mode<synchronous>, transform_indices = @transform_1, window_bounds = array<i64: 32, 128>}, {pipeline_mode = #tpu.pipeline_mode<synchronous>, transform_indices = @transform_2, window_bounds = array<i64: 3, 128>}, {transform_indices = @transform_3, window_bounds = array<i64: 16, 128>}]} {
    %c0_i32 = arith.constant 0 : i32
    %0 = arith.cmpi eq, %arg1, %c0_i32 : i32
    %1 = arith.extui %0 : i1 to i32
    %c0_i32_0 = arith.constant 0 : i32
    %2 = arith.cmpi ne, %1, %c0_i32_0 : i32
    scf.if %2 {
      %cst_10 = arith.constant 0.000000e+00 : f32
      %12 = vector.broadcast %cst_10 : f32 to vector<16x128xf32>
      %c0_11 = arith.constant 0 : index
      %c0_12 = arith.constant 0 : index
      %13 = vector.load %arg6[%c0_11, %c0_12] : memref<16x128xf32, #tpu.memory_space<vmem>>, vector<16x128xf32>
      tpu.vector_store %arg6[%c0_11, %c0_12], %12 {strides = array<i32>} : memref<16x128xf32, #tpu.memory_space<vmem>>, vector<16x128xf32>,
    } else {
    }
    %c0 = arith.constant 0 : index
    %c0_1 = arith.constant 0 : index
    %3 = vector.load %arg6[%c0, %c0_1] : memref<16x128xf32, #tpu.memory_space<vmem>>, vector<16x128xf32>
    %c0_2 = arith.constant 0 : index
    %c0_3 = arith.constant 0 : index
    %4 = vector.load %arg2[%c0_2, %c0_3] : memref<16x32xbf16, #tpu.memory_space<vmem>>, vector<16x32xbf16>
    %c0_4 = arith.constant 0 : index
    %c0_5 = arith.constant 0 : index
    %5 = vector.load %arg3[%c0_4, %c0_5] : memref<32x128xbf16, #tpu.memory_space<vmem>>, vector<32x128xbf16>
    %cst = arith.constant dense<0.000000e+00> : vector<16x128xf32>
    %6 = tpu.matmul %4, %5, %cst {dimension_numbers = #tpu.dot_dimension_numbers<[1], [0], [0], [1], [0, 0, 1, 1], [], []>} : vector<16x32xbf16>, vector<32x128xbf16>, vector<16x128xf32> -> vector<16x128xf32>
    %7 = arith.addf %3, %6 : vector<16x128xf32>
    %c0_6 = arith.constant 0 : index
    %c0_7 = arith.constant 0 : index
    %8 = vector.load %arg6[%c0_6, %c0_7] : memref<16x128xf32, #tpu.memory_space<vmem>>, vector<16x128xf32>
    tpu.vector_store %arg6[%c0_6, %c0_7], %7 {strides = array<i32>} : memref<16x128xf32, #tpu.memory_space<vmem>>, vector<16x128xf32>,
    %c0_i32_8 = arith.constant 0 : i32
    %9 = arith.cmpi eq, %arg1, %c0_i32_8 : i32
    %10 = arith.extui %9 : i1 to i32
    %c0_i32_9 = arith.constant 0 : i32
    %11 = arith.cmpi ne, %10, %c0_i32_9 : i32
    scf.if %11 {
      %c0_10 = arith.constant 0 : index
      %c0_11 = arith.constant 0 : index
      %12 = vector.load %arg4[%c0_10, %c0_11] : memref<3x128xf32, #tpu.memory_space<vmem>>, vector<1x128xf32>
      %c1 = arith.constant 1 : index
      %c0_12 = arith.constant 0 : index
      %13 = vector.load %arg4[%c1, %c0_12] : memref<3x128xf32, #tpu.memory_space<vmem>>, vector<1x128xf32>
      %c2 = arith.constant 2 : index
      %c0_13 = arith.constant 0 : index
      %14 = vector.load %arg4[%c2, %c0_13] : memref<3x128xf32, #tpu.memory_space<vmem>>, vector<1x128xf32>
      %c0_14 = arith.constant 0 : index
      %c0_15 = arith.constant 0 : index
      %15 = vector.load %arg6[%c0_14, %c0_15] : memref<16x128xf32, #tpu.memory_space<vmem>>, vector<16x128xf32>
      %16 = vector.broadcast %12 : vector<1x128xf32> to vector<16x128xf32>
      %17 = arith.addf %15, %16 : vector<16x128xf32>
      %cst_16 = arith.constant dense<0.000000e+00> : vector<16xf32>
      %18 = vector.multi_reduction <add>, %17, %cst_16 [1] : vector<16x128xf32> to vector<16xf32>
      %19 = vector.shape_cast %18 : vector<16xf32> to vector<16x1xf32>
      %cst_17 = arith.constant 1.562500e-02 : f32
      %20 = vector.broadcast %cst_17 : f32 to vector<16x1xf32>
      %21 = arith.mulf %19, %20 : vector<16x1xf32>
      %22 = vector.broadcast %21 : vector<16x1xf32> to vector<16x128xf32>
      %23 = arith.subf %17, %22 : vector<16x128xf32>
      %24 = arith.mulf %23, %23 : vector<16x128xf32>
      %cst_18 = arith.constant dense<0.000000e+00> : vector<16xf32>
      %25 = vector.multi_reduction <add>, %24, %cst_18 [1] : vector<16x128xf32> to vector<16xf32>
      %26 = vector.shape_cast %25 : vector<16xf32> to vector<16x1xf32>
      %27 = arith.mulf %21, %21 : vector<16x1xf32>
      %cst_19 = arith.constant 6.400000e+01 : f32
      %28 = vector.broadcast %cst_19 : f32 to vector<16x1xf32>
      %29 = arith.mulf %28, %27 : vector<16x1xf32>
      %30 = arith.subf %26, %29 : vector<16x1xf32>
      %cst_20 = arith.constant 1.562500e-02 : f32
      %31 = vector.broadcast %cst_20 : f32 to vector<16x1xf32>
      %32 = arith.mulf %30, %31 : vector<16x1xf32>
      %cst_21 = arith.constant 0.000000e+00 : f32
      %33 = vector.broadcast %cst_21 : f32 to vector<16x1xf32>
      %34 = arith.maximumf %32, %33 : vector<16x1xf32>
      %cst_22 = arith.constant 9.99999974E-6 : f32
      %35 = vector.broadcast %cst_22 : f32 to vector<16x1xf32>
      %36 = arith.addf %34, %35 : vector<16x1xf32>
      %37 = math.rsqrt %36 : vector<16x1xf32>
      %38 = vector.broadcast %37 : vector<16x1xf32> to vector<16x128xf32>
      %39 = arith.mulf %23, %38 : vector<16x128xf32>
      %40 = vector.broadcast %13 : vector<1x128xf32> to vector<16x128xf32>
      %41 = arith.mulf %39, %40 : vector<16x128xf32>
      %42 = vector.broadcast %14 : vector<1x128xf32> to vector<16x128xf32>
      %43 = arith.addf %41, %42 : vector<16x128xf32>
      %cst_23 = arith.constant 5.000000e-01 : f32
      %44 = vector.broadcast %cst_23 : f32 to vector<16x128xf32>
      %45 = arith.mulf %44, %43 : vector<16x128xf32>
      %cst_24 = arith.constant 0.707106769 : f32
      %46 = vector.broadcast %cst_24 : f32 to vector<16x128xf32>
      %47 = arith.mulf %43, %46 : vector<16x128xf32>
      %48 = math.erf %47 : vector<16x128xf32>
      %cst_25 = arith.constant 1.000000e+00 : f32
      %49 = vector.broadcast %cst_25 : f32 to vector<16x128xf32>
      %50 = arith.addf %49, %48 : vector<16x128xf32>
      %51 = arith.mulf %45, %50 : vector<16x128xf32>
      %c0_26 = arith.constant 0 : index
      %c0_27 = arith.constant 0 : index
      %52 = vector.load %arg5[%c0_26, %c0_27] : memref<16x128xf32, #tpu.memory_space<vmem>>, vector<16x128xf32>
      tpu.vector_store %arg5[%c0_26, %c0_27], %51 {strides = array<i32>} : memref<16x128xf32, #tpu.memory_space<vmem>>, vector<16x128xf32>,
    } else {
    }
    return
  }
  func.func @transform_0(%arg0: i32, %arg1: i32) -> (i32, i32) {
    %c0_i32 = arith.constant 0 : i32
    %c0_i32_0 = arith.constant 0 : i32
    return %arg0, %c0_i32 : i32, i32
  }
  func.func @transform_1(%arg0: i32, %arg1: i32) -> (i32, i32) {
    %c0_i32 = arith.constant 0 : i32
    %c0_i32_0 = arith.constant 0 : i32
    %c0_i32_1 = arith.constant 0 : i32
    return %c0_i32, %c0_i32_0 : i32, i32
  }
  func.func @transform_2(%arg0: i32, %arg1: i32) -> (i32, i32) {
    %c0_i32 = arith.constant 0 : i32
    %c0_i32_0 = arith.constant 0 : i32
    %c0_i32_1 = arith.constant 0 : i32
    return %c0_i32, %c0_i32_0 : i32, i32
  }
  func.func @transform_3(%arg0: i32, %arg1: i32) -> (i32, i32) {
    %c0_i32 = arith.constant 0 : i32
    %c0_i32_0 = arith.constant 0 : i32
    return %arg0, %c0_i32 : i32, i32
  }
}

</mosaic_0001>

<llo_original>
// kernel: tpu_custom_call.1
$region0: #{tpu_custom_call.1}
  #allocation0 [shape = 'u32[]', space=smem, size = 0x4, offset = 0x4, fixed_abs, tag = 'smem constant byte address 0x4 - core index']
  #allocation1 [shape = 'u32[72,128]{1,0:T(1,128)}', space=vmem, size = 0x9000, scoped, tag = 'internal scratch']
  #allocation2 [shape = 'f32[16,128]{1,0:T(8,128)}', space=vmem, size = 0x2000, scoped, tag = 'scratch operand']
  %s0 = inlined_call_operand.hbm [shape: bf16[16,32], index: 0, kind: input, shape index: {}]
  %s1 = inlined_call_operand.hbm [shape: bf16[32,128], index: 1, kind: input, shape index: {}]
  %s2 = inlined_call_operand.hbm [shape: f32[3,128], index: 2, kind: input, shape index: {}]
  %s3 = inlined_call_operand.hbm [shape: f32[16,128], index: 3, kind: output, shape index: {}]
  %s4 = sld [smem:[#allocation0]]
  $region42: #{tpu_custom_call.1} parent=0
    _
  %s6 = ssub.s32 1, %s4
  %s7 = scalar_select 0, %s6, %s4
  $region1: #{tpu_custom_call.1} parent=0
    #allocation3 [shape = 'u8[4096]{0}', space=vmem, size = 0x1000, scoped, tag = 'input window, operand 0, single buffered']
    #allocation4 [shape = 's32[1]{0}', space=sflag, size = 0x4, scoped, tag = 'scoped memory for tpu_custom_call.1']
    #allocation5 [shape = 's32[1]{0}', space=sflag, size = 0x4, scoped, tag = 'scoped memory for tpu_custom_call.1']
    #allocation6 [shape = 'u8[8192]{0}', space=vmem, size = 0x2000, scoped, tag = 'input window, operand 1, single buffered']
    #allocation7 [shape = 's32[1]{0}', space=sflag, size = 0x4, scoped, tag = 'scoped memory for tpu_custom_call.1']
    #allocation8 [shape = 'u8[2048]{0}', space=vmem, size = 0x800, scoped, tag = 'input window, operand 2, single buffered']
    #allocation9 [shape = 'u8[8192]{0}', space=vmem, size = 0x2000, scoped, tag = 'output window, operand 0, single buffered']
    %8 = vsyncpa [#allocation4], 0
    %9 = vsyncpa [#allocation7], 0
    %10 = vsyncpa [#allocation5], 0
    // Predicated region
    $region2: #{tpu_custom_call.1} parent=1 // pred_check
      _
    $region3: #{tpu_custom_call.1} parent=1 // pred_check_branch
      %12 = sbr.rel (0) target = $region5
    $region4: #{tpu_custom_call.1} parent=1 // pred_region
      %14 = vsyncadd [#allocation4], 0
      %s15 = sshll.u32 %s0, 4
      %s16 = int_to_ptr.hbm [resolvable:$true] %s15
      %s17 = sshll.u32 [#allocation3], 4
      %s18 = int_to_ptr.vmem [resolvable:$true] %s17
      %23 = dma.hbm_to_vmem [thread:$0]  %s16, 128, %s18, [#allocation4], 64, 64, 4
    $region5: #{tpu_custom_call.1} parent=1 // pred_fallthru
      _
    // Predicated region
    $region6: #{tpu_custom_call.1} parent=1 // pred_check
      _
    $region7: #{tpu_custom_call.1} parent=1 // pred_check_branch
      %25 = sbr.rel (0) target = $region9
    $region8: #{tpu_custom_call.1} parent=1 // pred_region
      %27 = vsyncadd [#allocation7], 0
      %s28 = sshll.u32 %s1, 4
      %s29 = int_to_ptr.hbm [resolvable:$true] %s28
      %s30 = sshll.u32 [#allocation6], 4
      %s31 = int_to_ptr.vmem [resolvable:$true] %s30
      %36 = dma.hbm_to_vmem [thread:$0]  %s29, 256, %s31, [#allocation7], 64, 64, 4
    $region9: #{tpu_custom_call.1} parent=1 // pred_fallthru
      _
    // Predicated region
    $region10: #{tpu_custom_call.1} parent=1 // pred_check
      _
    $region11: #{tpu_custom_call.1} parent=1 // pred_check_branch
      %38 = sbr.rel (0) target = $region13
    $region12: #{tpu_custom_call.1} parent=1 // pred_region
      %40 = vsyncadd [#allocation7], 0
      %s42 = sshll.u32 %s2, 4
      %s43 = int_to_ptr.hbm [resolvable:$true] %s42
      %s44 = sshll.u32 [#allocation8], 4
      %s45 = int_to_ptr.vmem [resolvable:$true] %s44
      %47 = dma.hbm_to_vmem [thread:$0]  %s43, 64, %s45, [#allocation7]
    $region13: #{tpu_custom_call.1} parent=1 // pred_fallthru
      _
    // Predicated region
    $region14: #{tpu_custom_call.1} parent=1 // pred_check
      _
    $region15: #{tpu_custom_call.1} parent=1 // pred_check_branch
      %49 = sbr.rel (0) target = $region17
    $region16: #{tpu_custom_call.1} parent=1 // pred_region
      %51 = dma.done [#allocation4], 128
    $region17: #{tpu_custom_call.1} parent=1 // pred_fallthru
      _
    // Predicated region
    $region18: #{tpu_custom_call.1} parent=1 // pred_check
      _
    $region19: #{tpu_custom_call.1} parent=1 // pred_check_branch
      %53 = sbr.rel (0) target = $region21
    $region20: #{tpu_custom_call.1} parent=1 // pred_region
      %55 = dma.done [#allocation7], 256
    $region21: #{tpu_custom_call.1} parent=1 // pred_fallthru
      _
    // Predicated region
    $region22: #{tpu_custom_call.1} parent=1 // pred_check
      _
    $region23: #{tpu_custom_call.1} parent=1 // pred_check_branch
      %57 = sbr.rel (0) target = $region25
    $region24: #{tpu_custom_call.1} parent=1 // pred_region
      %59 = dma.done [#allocation7], 64
    $region25: #{tpu_custom_call.1} parent=1 // pred_fallthru
      _
    %p61 = scmp.eq.s32.totalorder 0, 0
    // Predicated region
    $region26: #{tpu_custom_call.1} parent=1 // pred_check
      %p62 = pneg %p61
    $region27: #{tpu_custom_call.1} parent=1 // pred_check_branch
      %64 = sbr.rel (%p62) target = $region29
    $region28: #{tpu_custom_call.1} parent=1 // pred_region
      %65 = vst [vmem:[#allocation2] sm:$0xff] 0.0
      %66 = vst [vmem:[#allocation2 + $0x8] sm:$0xff] 0.0
    $region29: #{tpu_custom_call.1} parent=1 // pred_fallthru
      _
    %v67 = vld [vmem:[#allocation2] sm:$0xff]
    %v68 = vld [vmem:[#allocation2 + $0x8] sm:$0xff]
    %v69 = vld [vmem:[#allocation3] sm:$0xf]
    %v70 = vld [vmem:[#allocation3 + $0x4] sm:$0xf]
    %v71 = vld [vmem:[#allocation6] sm:$0xf]
    %v72 = vld [vmem:[#allocation6 + $0x4] sm:$0xf]
    %v73 = vld [vmem:[#allocation6 + $0x8] sm:$0xf]
    %v74 = vld [vmem:[#allocation6 + $0xc] sm:$0xf]
    %v77 = vunpack.c.l.b16 %v69
    %v78 = vunpack.c.l.b16 %v70
    %v79 = vpack.c.b16 %v78, %v77
    %v84 = vunpack.c.l.b16 %v71
    %v85 = vunpack.c.l.b16 %v72
    %v86 = vunpack.c.l.b16 %v73
    %v87 = vunpack.c.l.b16 %v74
    %v88 = vpack.c.b16 %v85, %v84
    %v89 = vpack.c.b16 %v87, %v86
    %vm92 = vcmask 261120
    %v94 = vsel %vm92, %v79, 0
    %96 = vmatpush.bf16.msra.mxu0 0
    %97 = vmatpush.bf16.msra.mxu0 0
    %98 = vmatpush.bf16.msra.mxu0 0
    %99 = vmatpush.bf16.msra.mxu0 0
    %100 = vmatpush.bf16.msra.mxu0 0
    %101 = vmatpush.bf16.msra.mxu0 0
    %102 = vmatpush.bf16.msra.mxu0 %v89
    %103 = vmatpush.bf16.msra.mxu0 %v88
    %104 = vmatmul.bf16.gmra.mxu0 %v94
    %v105 = vpop.f32.mrf.mxu0
    %v106 = vadd.f32 0.0, %v105
    %v107 = vpop.f32.mrf.mxu0
    %v108 = vadd.f32 0.0, %v107
    %109 = vdwg.mxu0
    %v110 = vadd.f32 %v67, %v106
    %v111 = vadd.f32 %v68, %v108
    %112 = vst [vmem:[#allocation2] sm:$0xff] %v110
    %113 = vst [vmem:[#allocation2 + $0x8] sm:$0xff] %v111
    // Predicated region
    $region30: #{tpu_custom_call.1} parent=1 // pred_check
      %p114 = pneg %p61
    $region31: #{tpu_custom_call.1} parent=1 // pred_check_branch
      %116 = sbr.rel (%p114) target = $region33
    $region32: #{tpu_custom_call.1} parent=1 // pred_region
      %v117 = vld [vmem:[#allocation8] sm:$0x1]
      %v118 = vld [vmem:[#allocation8 + $0x1] sm:$0x1]
      %v119 = vld [vmem:[#allocation8 + $0x2] sm:$0x1]
      %v120 = vld [vmem:[#allocation2] sm:$0xff]
      %v121 = vld [vmem:[#allocation2 + $0x8] sm:$0xff]
      %v122 = vperm.slane %v117, 0
      %v123 = vadd.f32 %v120, %v122
      %v124 = vadd.f32 %v121, %v122
      %125 = vadd.xlane.f32.xlu0 %v123
      %v126 = vpop.xlane.xlu0 %125
      %127 = vadd.xlane.f32.xlu0 %v124
      %v128 = vpop.xlane.xlu0 %127
      %v129 = vmul.f32 %v126, 0.015625
      %v130 = vmul.f32 %v128, 0.015625
      %v131 = vsub.f32 %v123, %v129
      %v132 = vsub.f32 %v124, %v130
      %v133 = vmul.f32 %v131, %v131
      %v134 = vmul.f32 %v132, %v132
      %135 = vadd.xlane.f32.xlu0 %v133
      %v136 = vpop.xlane.xlu0 %135
      %137 = vadd.xlane.f32.xlu0 %v134
      %v138 = vpop.xlane.xlu0 %137
      %v139 = vmul.f32 %v129, %v129
      %v140 = vmul.f32 %v130, %v130
      %v141 = vmul.f32 %v139, 64.0
      %v142 = vmul.f32 %v140, 64.0
      %v143 = vsub.f32 %v136, %v141
      %v144 = vsub.f32 %v138, %v142
      %v145 = vmul.f32 %v143, 0.015625
      %v146 = vmul.f32 %v144, 0.015625
      %v147 = vmax.f32 %v145, 0.0
      %v148 = vmax.f32 %v146, 0.0
      %v149 = vadd.f32 %v147, 1e-05
      %v150 = vadd.f32 %v148, 1e-05
      %v151 = vrsqrt.pop %v149
      %v152 = vmul.f32 %v151, %v149
      %v153 = vmul.f32 %v152, %v151
      %v154 = vmul.f32 0.5, %v153
      %v155 = vsub.f32 1.5, %v154
      %v156 = vmul.f32 %v151, %v155
      %vm157 = vweird.f32 %v149
      %vm158 = vweird.f32 %v151
      %vm159 = vmor %vm157, %vm158
      %v160 = vsel %vm159, %v151, %v156
      %v161 = vrsqrt.pop %v150
      %v162 = vmul.f32 %v161, %v150
      %v163 = vmul.f32 %v162, %v161
      %v164 = vmul.f32 0.5, %v163
      %v165 = vsub.f32 1.5, %v164
      %v166 = vmul.f32 %v161, %v165
      %vm167 = vweird.f32 %v150
      %vm168 = vweird.f32 %v161
      %vm169 = vmor %vm167, %vm168
      %v170 = vsel %vm169, %v161, %v166
      %v171 = vmul.f32 %v131, %v160
      %v172 = vmul.f32 %v132, %v170
      %v173 = vperm.slane %v118, 0
      %v174 = vmul.f32 %v171, %v173
      %v175 = vmul.f32 %v172, %v173
      %v176 = vperm.slane %v119, 0
      %v177 = vadd.f32 %v174, %v176
      %v178 = vadd.f32 %v175, %v176
      %v179 = vmul.f32 %v177, 0.5
      %v180 = vmul.f32 %v178, 0.5
      %v181 = vmul.f32 %v177, 0.70710677
      %v182 = vmul.f32 %v178, 0.70710677
      %v183 = vmul.f32 %v181, %v181
      %v184 = vmin.f32 16.0, %v183
      %v185 = vmul.f32 %v184, 2.1237322e-06
      %v186 = vadd.f32 %v185, 0.00028619796
      %v187 = vmul.f32 %v184, %v186
      %v188 = vadd.f32 %v187, 0.0036580483
      %v189 = vmul.f32 %v184, %v188
      %v190 = vadd.f32 %v189, 0.05243302
      %v191 = vmul.f32 %v184, %v190
      %v192 = vadd.f32 %v191, 0.18741608
      %v193 = vmul.f32 %v184, %v192
      %v194 = vadd.f32 %v193, 1.1283791
      %v195 = vmul.f32 %v181, %v194
      %v196 = vmul.f32 %v184, 3.8918573e-05
      %v197 = vadd.f32 %v196, 0.001143296
      %v198 = vmul.f32 %v184, %v197
      %v199 = vadd.f32 %v198, 0.014752088
      %v200 = vmul.f32 %v184, %v199
      %v201 = vadd.f32 %v200, 0.112945676
      %v202 = vmul.f32 %v184, %v201
      %v203 = vadd.f32 %v202, 0.4994258
      %v204 = vmul.f32 %v184, %v203
      %v205 = vadd.f32 %v204, 1.0
      %v206 = vrcp.pop %v205
      %v207 = vmul.f32 %v205, %v206
      %v208 = vsub.f32 1.0, %v207
      %v209 = vmul.f32 %v206, %v208
      %v210 = vadd.f32 %v206, %v209
      %vm211 = vweird.f32 %v205
      %vm212 = vweird.f32 %v206
      %vm213 = vmor %vm211, %vm212
      %v214 = vsel %vm213, %v206, %v210
      %v215 = vand.u32 2147483647, %v205
      %vm216 = vcmp.eq.f32.partialorder %v215, 8.507059e+37
      %v217 = vand.u32 %v205, 2147483648
      %v218 = vor.u32 1.1754944e-38, %v217
      %v219 = vsel %vm216, %v218, %v214
      %v220 = vmul.f32 %v195, %v219
      %v221 = vmin.f32 %v220, 1.0
      %v222 = vmax.f32 %v221, -1.0
      %v223 = vmul.f32 %v182, %v182
      %v224 = vmin.f32 16.0, %v223
      %v225 = vmul.f32 %v224, 2.1237322e-06
      %v226 = vadd.f32 %v225, 0.00028619796
      %v227 = vmul.f32 %v224, %v226
      %v228 = vadd.f32 %v227, 0.0036580483
      %v229 = vmul.f32 %v224, %v228
      %v230 = vadd.f32 %v229, 0.05243302
      %v231 = vmul.f32 %v224, %v230
      %v232 = vadd.f32 %v231, 0.18741608
      %v233 = vmul.f32 %v224, %v232
      %v234 = vadd.f32 %v233, 1.1283791
      %v235 = vmul.f32 %v182, %v234
      %v236 = vmul.f32 %v224, 3.8918573e-05
      %v237 = vadd.f32 %v236, 0.001143296
      %v238 = vmul.f32 %v224, %v237
      %v239 = vadd.f32 %v238, 0.014752088
      %v240 = vmul.f32 %v224, %v239
      %v241 = vadd.f32 %v240, 0.112945676
      %v242 = vmul.f32 %v224, %v241
      %v243 = vadd.f32 %v242, 0.4994258
      %v244 = vmul.f32 %v224, %v243
      %v245 = vadd.f32 %v244, 1.0
      %v246 = vrcp.pop %v245
      %v247 = vmul.f32 %v245, %v246
      %v248 = vsub.f32 1.0, %v247
      %v249 = vmul.f32 %v246, %v248
      %v250 = vadd.f32 %v246, %v249
      %vm251 = vweird.f32 %v245
      %vm252 = vweird.f32 %v246
      %vm253 = vmor %vm251, %vm252
      %v254 = vsel %vm253, %v246, %v250
      %v255 = vand.u32 2147483647, %v245
      %vm256 = vcmp.eq.f32.partialorder %v255, 8.507059e+37
      %v257 = vand.u32 %v245, 2147483648
      %v258 = vor.u32 1.1754944e-38, %v257
      %v259 = vsel %vm256, %v258, %v254
      %v260 = vmul.f32 %v235, %v259
      %v261 = vmin.f32 %v260, 1.0
      %v262 = vmax.f32 %v261, -1.0
      %v263 = vadd.f32 %v222, 1.0
      %v264 = vadd.f32 %v262, 1.0
      %v265 = vmul.f32 %v179, %v263
      %v266 = vmul.f32 %v180, %v264
      %267 = vst [vmem:[#allocation9] sm:$0xff] %v265
      %268 = vst [vmem:[#allocation9 + $0x8] sm:$0xff] %v266
    $region33: #{tpu_custom_call.1} parent=1 // pred_fallthru
      _
    // Predicated region
    $region34: #{tpu_custom_call.1} parent=1 // pred_check
      _
    $region35: #{tpu_custom_call.1} parent=1 // pred_check_branch
      %270 = sbr.rel (0) target = $region37
    $region36: #{tpu_custom_call.1} parent=1 // pred_region
      %272 = vsyncadd [#allocation5], 0
      %s273 = sshll.u32 [#allocation9], 4
      %s274 = int_to_ptr.vmem [resolvable:$true] %s273
      %s275 = sshll.u32 %s3, 4
      %s276 = int_to_ptr.hbm [resolvable:$true] %s275
      %281 = dma.vmem_to_hbm [thread:$0]  %s274, 256, %s276, [#allocation5], 128, 128, 8
    $region37: #{tpu_custom_call.1} parent=1 // pred_fallthru
      _
    // Predicated region
    $region38: #{tpu_custom_call.1} parent=1 // pred_check
      _
    $region39: #{tpu_custom_call.1} parent=1 // pred_check_branch
      %283 = sbr.rel (0) target = $region41
    $region40: #{tpu_custom_call.1} parent=1 // pred_region
      %285 = dma.done [#allocation5], 256
    $region41: #{tpu_custom_call.1} parent=1 // pred_fallthru
      _
    %286 = vsyncpa [#allocation4], 1
    %287 = vsyncpa [#allocation7], 1
    %288 = vsyncpa [#allocation5], 1

</llo_original>
